<compile_context>
chip_gen: v7x
topology: tpu7x:2x2x1
jax: 0.10.0
libtpu: 0.0.40
codegen_flags: <defaults>
</compile_context>

<pallas_src>
import functools
import math

import jax
import jax.numpy as jnp
from jax.experimental import pallas as pl
from jax.experimental.pallas import tpu as pltpu


_INV_SQRT2 = 1.0 / math.sqrt(2.0)
_DEFAULT_TM = 512          # token-tile rows used for planning / large M


def _round_up(x, m):
    return ((x + m - 1) // m) * m


def _cdiv(a, b):
    return (a + b - 1) // b


def _vmem_capacity_bytes():
    """Physical VMEM of the current TPU generation (conservative fallback)."""
    try:
        info = pltpu.get_tpu_info()
        cap = getattr(info, "vmem_capacity_bytes", None)
        if cap:
            return int(cap)
    except Exception:
        pass
    return 64 * 1024 * 1024   # v7x per-TC VMEM; safe lower bound for all gens


def _vmem_need_bytes(tm, tn, dim, x_itemsize, out_itemsize):
    """Conservative VMEM accounting for one grid step (incl. double buffers)."""
    dim_r = _round_up(dim, 128)
    tn_r = _round_up(tn, 128)
    return (
        2 * tm * dim_r * x_itemsize        # x tile (native dtype), double-buffered
        + tm * dim_r * 2                   # in-kernel bf16 copy of x tile
        + 2 * dim_r * tn_r * 2             # w1 block (bf16), 2 buffers
        + 2 * tn_r * dim_r * 2             # w2 block (bf16), 2 buffers
        + 2 * 8 * tn_r * 4                 # b1 block (f32, rows padded to 8)
        + 2 * 8 * dim_r * 4                # b2 block (f32)
        + 2 * tm * dim_r * out_itemsize    # output tile, double-buffered
        + tm * tn_r * (4 + 2)              # h intermediate: f32 + bf16 copy
        + tm * dim_r * 4                   # f32 accumulator / 2nd-matmul result
    )


def _plan_hidden_tile(dim, hidden, x_itemsize=4, out_itemsize=4, tm=_DEFAULT_TM):
    """Pick hidden tile tn and padded hidden hidden_p.

    tn == hidden_p means w1/w2 stay fully VMEM-resident for the whole grid
    (single hidden block).  Decision is made per TPU generation from physical
    VMEM (v5e/v6e: 128 MiB, v7x: 64 MiB per TensorCore).
    """
    budget = int(_vmem_capacity_bytes() * 0.7)   # headroom for Mosaic scratch
    if _vmem_need_bytes(tm, hidden, dim, x_itemsize, out_itemsize) <= budget:
        return hidden, hidden                    # resident weights
    tn = max((hidden // 128) * 128, 128)
    while tn > 128 and _vmem_need_bytes(tm, tn, dim, x_itemsize, out_itemsize) > budget:
        tn -= 128
    hidden_p = _round_up(hidden, tn)
    return tn, hidden_p


def _gelu(h, approx):
    if approx:
        # tanh-approx GELU: transcendental lands on the EUP slot (frees VALU).
        # NOTE: does not bit-match nn.GELU()'s default erf semantics (~1e-3).
        c = jnp.float32(math.sqrt(2.0 / math.pi))
        return 0.5 * h * (1.0 + jnp.tanh(c * (h + 0.044715 * h * h * h)))
    # Exact erf GELU (matches nn.GELU() default), computed in f32.
    return 0.5 * h * (1.0 + jax.lax.erf(h * jnp.float32(_INV_SQRT2)))


# --------------------------------------------------------------------------- #
# Kernels
# --------------------------------------------------------------------------- #
def _mlp_kernel_resident(x_ref, w1_ref, b1_ref, w2_ref, b2_ref, o_ref, *,
                         approx_gelu):
    """Grid = (token_tiles,). Whole hidden dim in one block: no reduction axis."""
    x = x_ref[...].astype(jnp.bfloat16)            # cast in-kernel, not in HBM
    h = jnp.dot(x, w1_ref[...], preferred_element_type=jnp.float32) + b1_ref[...]
    h = _gelu(h, approx_gelu)
    o = jnp.dot(h.astype(jnp.bfloat16), w2_ref[...],
                preferred_element_type=jnp.float32) + b2_ref[...]
    o_ref[...] = o.astype(o_ref.dtype)


def _mlp_kernel_streamed(x_ref, w1_ref, b1_ref, w2_ref, b2_ref, o_ref, *acc,
                         approx_gelu):
    """Grid = (token_tiles, hidden_tiles); hidden ("arbitrary") is a reduction.

    If `acc` is empty, o_ref is f32 and resident across the hidden axis, so we
    accumulate straight into it (initialized with the b2 broadcast).  Otherwise
    an f32 VMEM scratch accumulates and the last step casts into o_ref.
    """
    n = pl.program_id(1)
    x = x_ref[...].astype(jnp.bfloat16)
    h = jnp.dot(x, w1_ref[...], preferred_element_type=jnp.float32) + b1_ref[...]
    h = _gelu(h, approx_gelu)
    part = jnp.dot(h.astype(jnp.bfloat16), w2_ref[...],
                   preferred_element_type=jnp.float32)
    acc_ref = acc[0] if acc else o_ref

    @pl.when(n == 0)
    def _init():
        acc_ref[...] = part + b2_ref[...]

    @pl.when(n > 0)
    def _accumulate():
        acc_ref[...] += part

    if acc:
        @pl.when(n == pl.num_programs(1) - 1)
        def _finalize():
            o_ref[...] = acc_ref[...].astype(o_ref.dtype)


# --------------------------------------------------------------------------- #
# Wrappers
# --------------------------------------------------------------------------- #
def prepare_mlp_params(w1, b1, w2, b2):
    """One-time parameter prep (keep OUT of the per-call path).

    Casts weights to bf16, pads the hidden dim if it will be streamed, and
    chooses the hidden tile `tn` from the current TPU generation's VMEM.
    Returns (w1p, b1p, w2p, b2p, tn); pass `tn` to mlp_pallas as a static arg.
    Zero padding is exact: gelu(0 + b1_pad=0) = 0 and padded w2 rows are zero.
    """
    dim, hidden = w1.shape
    tn, hidden_p = _plan_hidden_tile(dim, hidden)
    ph = hidden_p - hidden
    w1p = jnp.pad(w1, ((0, 0), (0, ph))).astype(jnp.bfloat16)           # (dim, hidden_p)
    w2p = jnp.pad(w2, ((0, ph), (0, 0))).astype(jnp.bfloat16)           # (hidden_p, dim)
    b1p = jnp.pad(b1.astype(jnp.float32), ((0, ph),)).reshape(1, hidden_p)
    b2p = b2.astype(jnp.float32).reshape(1, dim)
    return w1p, b1p, w2p, b2p, tn


@functools.partial(jax.jit, static_argnames=("tn", "tm", "use_tanh_gelu"))
def mlp_pallas(x, w1p, b1p, w2p, b2p, *, tn, tm=_DEFAULT_TM, use_tanh_gelu=False):
    """x: (..., dim); prepared params from prepare_mlp_params.

    Returns same shape/dtype as x.  Matmuls run bf16 x bf16 -> f32 on the MXU;
    bias add + GELU in f32.
    """
    orig_shape = x.shape
    dim = orig_shape[-1]
    hidden_p = w1p.shape[1]
    assert w1p.shape[0] == dim and w2p.shape == (hidden_p, dim)
    assert hidden_p % tn == 0

    M = 1
    for s in orig_shape[:-1]:
        M *= s
    x2d = x.reshape(M, dim)

    # ---- token tile: large, multiple of 8; make the tile count even so both
    # v7x TensorCores get work (harmless on 1-TC v5e/v6e).
    tm_eff = _round_up(min(tm, _round_up(M, 8)), 8)
    ntiles = _cdiv(M, tm_eff)
    if ntiles % 2 == 1 and M > 8:
        tm_try = _round_up(_cdiv(M, ntiles + 1), 8)
        if _cdiv(M, tm_try) % 2 == 0:
            tm_eff = tm_try
            ntiles = _cdiv(M, tm_eff)
    M_p = ntiles * tm_eff
    if M_p != M:
        x2d = jnp.pad(x2d, ((0, M_p - M), (0, 0)))   # zero rows, sliced off below

    x_itemsize = x2d.dtype.itemsize
    out_itemsize = jnp.dtype(x.dtype).itemsize
    resident = (tn == hidden_p)
    n_hidden_tiles = hidden_p // tn

    # ---- explicit VMEM budget and per-generation cap (never full physical).
    vmem_need = _vmem_need_bytes(tm_eff, tn, dim, x_itemsize, out_itemsize)
    phys = _vmem_capacity_bytes()
    vmem_limit = int(min(max(vmem_need + vmem_need // 4 + (2 << 20), 32 << 20),
                         int(phys * 0.85)))

    # Advisory cost: weights are re-read once per token tile when streamed.
    weight_reads = 1 if resident else ntiles
    cost = pl.CostEstimate(
        flops=4 * M_p * dim * hidden_p,
        transcendentals=M_p * hidden_p,
        bytes_accessed=(x2d.size * x_itemsize
                        + weight_reads * (w1p.size + w2p.size) * 2
                        + weight_reads * (b1p.size + b2p.size) * 4
                        + M_p * dim * out_itemsize),
    )

    if resident:
        grid = (ntiles,)
        in_specs = [
            pl.BlockSpec((tm_eff, dim), lambda i: (i, 0)),       # x tile
            pl.BlockSpec((dim, hidden_p), lambda i: (0, 0)),     # w1 (VMEM-resident)
            pl.BlockSpec((1, hidden_p), lambda i: (0, 0)),       # b1
            pl.BlockSpec((hidden_p, dim), lambda i: (0, 0)),     # w2 (VMEM-resident)
            pl.BlockSpec((1, dim), lambda i: (0, 0)),            # b2
        ]
        out_spec = pl.BlockSpec((tm_eff, dim), lambda i: (i, 0))
        kernel = functools.partial(_mlp_kernel_resident, approx_gelu=use_tanh_gelu)
        scratch = []
        dim_sem = ("parallel",)
    else:
        grid = (ntiles, n_hidden_tiles)
        in_specs = [
            pl.BlockSpec((tm_eff, dim), lambda i, n: (i, 0)),    # x tile (resident over n)
            pl.BlockSpec((dim, tn), lambda i, n: (0, n)),        # w1 hidden block
            pl.BlockSpec((1, tn), lambda i, n: (0, n)),          # b1 hidden block
            pl.BlockSpec((tn, dim), lambda i, n: (n, 0)),        # w2 hidden block
            pl.BlockSpec((1, dim), lambda i, n: (0, 0)),         # b2 (resident)
        ]
        out_spec = pl.BlockSpec((tm_eff, dim), lambda i, n: (i, 0))
        kernel = functools.partial(_mlp_kernel_streamed, approx_gelu=use_tanh_gelu)
        # f32 output: accumulate directly into the resident output tile.
        scratch = [] if x.dtype == jnp.float32 else [pltpu.VMEM((tm_eff, dim), jnp.float32)]
        dim_sem = ("parallel", "arbitrary")

    out2d = pl.pallas_call(
        kernel,
        out_shape=jax.ShapeDtypeStruct((M_p, dim), x.dtype),
        grid_spec=pltpu.PrefetchScalarGridSpec(
            num_scalar_prefetch=0,
            grid=grid,
            in_specs=in_specs,
            out_specs=out_spec,
            scratch_shapes=scratch,
        ),
        compiler_params=pltpu.CompilerParams(
            dimension_semantics=dim_sem,
            vmem_limit_bytes=vmem_limit),
        cost_estimate=cost,
    )(x2d, w1p, b1p, w2p, b2p)

    if M_p != M:
        out2d = out2d[:M]
    return out2d.reshape(orig_shape)


# --------------------------------------------------------------------------- #
# Reference + demo
# --------------------------------------------------------------------------- #
def init_mlp_params(key, dim):
    """Deterministic init mimicking nn.Linear default (uniform +/- 1/sqrt(fan_in))."""
    hidden = 4 * dim
    k1, k2, k3, k4 = jax.random.split(key, 4)
    bound1 = 1.0 / math.sqrt(dim)
    bound2 = 1.0 / math.sqrt(hidden)
    # Stored as (in, out) so the kernel computes x @ W (PyTorch stores (out, in)).
    w1 = jax.random.uniform(k1, (dim, hidden), jnp.float32, -bound1, bound1)
    b1 = jax.random.uniform(k2, (hidden,), jnp.float32, -bound1, bound1)
    w2 = jax.random.uniform(k3, (hidden, dim), jnp.float32, -bound2, bound2)
    b2 = jax.random.uniform(k4, (dim,), jnp.float32, -bound2, bound2)
    return w1, b1, w2, b2


def mlp_ref_f32(x, w1, b1, w2, b2):
    """Pure f32 reference (exact erf GELU)."""
    h = jnp.einsum("bnd,dh->bnh", x, w1) + b1
    h = 0.5 * h * (1.0 + jax.lax.erf(h * jnp.float32(_INV_SQRT2)))
    return jnp.einsum("bnh,hd->bnd", h, w2) + b2


def mlp_ref_bf16(x, w1, b1, w2, b2):
    """Reference matching the kernel's mixed precision (bf16 MXU inputs, f32 accum)."""
    B, N, dim = x.shape
    h = jnp.dot(x.reshape(-1, dim).astype(jnp.bfloat16), w1.astype(jnp.bfloat16),
                preferred_element_type=jnp.float32) + b1
    h = 0.5 * h * (1.0 + jax.lax.erf(h * jnp.float32(_INV_SQRT2)))
    o = jnp.dot(h.astype(jnp.bfloat16), w2.astype(jnp.bfloat16),
                preferred_element_type=jnp.float32) + b2
    return o.reshape(B, N, dim)


if __name__ == "__main__":
    B, N, dim = 2, 8, 32   # hidden = 4*dim = 128 (small demo shapes)
    key = jax.random.PRNGKey(0)
    kx, kp = jax.random.split(key)
    x = jax.random.normal(kx, (B, N, dim), jnp.float32)
    w1, b1, w2, b2 = init_mlp_params(kp, dim)

    # One-time prep: weights cast/padded to bf16 + hidden tile chosen per TPU gen.
    w1p, b1p, w2p, b2p, tn = prepare_mlp_params(w1, b1, w2, b2)
    w1p, b1p, w2p, b2p = jax.block_until_ready((w1p, b1p, w2p, b2p))

    out = mlp_pallas(x, w1p, b1p, w2p, b2p, tn=tn)
    out = jax.block_until_ready(out)
    assert out.shape == (B, N, dim)

    ref_mixed = mlp_ref_bf16(x, w1, b1, w2, b2)
    ref_full = mlp_ref_f32(x, w1, b1, w2, b2)
    # Tight check vs a reference using the same bf16-in/f32-accum math.
    assert jnp.allclose(out, ref_mixed, atol=5e-3, rtol=5e-3), "mismatch vs bf16 reference"
    # Looser check vs the pure-f32 reference (bf16 MXU inputs cost ~1e-2 rel error).
    assert jnp.allclose(out, ref_full, atol=5e-2, rtol=5e-2), "mismatch vs f32 reference"

    print("KERNEL_OK")
</pallas_src>

<mosaic_0001>
module attributes {stable_mosaic.version = 11 : i64} {
  func.func @_mlp_kernel_resident(%arg0: i32, %arg1: memref<8x32xf32, #tpu.memory_space<vmem>>, %arg2: memref<32x128xbf16, #tpu.memory_space<vmem>>, %arg3: memref<1x128xf32, #tpu.memory_space<vmem>>, %arg4: memref<128x32xbf16, #tpu.memory_space<vmem>>, %arg5: memref<1x32xf32, #tpu.memory_space<vmem>>, %arg6: memref<8x32xf32, #tpu.memory_space<vmem>>) attributes {dimension_semantics = [#tpu.dimension_semantics<parallel>], iteration_bounds = array<i64: 2>, scalar_prefetch = 0 : i64, scratch_operands = 0 : i64, tpu.core_type = #tpu.core_type<tc>, window_params = [{transform_indices = @transform_0, window_bounds = array<i64: 8, 32>}, {pipeline_mode = #tpu.pipeline_mode<synchronous>, transform_indices = @transform_1, window_bounds = array<i64: 32, 128>}, {pipeline_mode = #tpu.pipeline_mode<synchronous>, transform_indices = @transform_2, window_bounds = array<i64: 1, 128>}, {pipeline_mode = #tpu.pipeline_mode<synchronous>, transform_indices = @transform_3, window_bounds = array<i64: 128, 32>}, {pipeline_mode = #tpu.pipeline_mode<synchronous>, transform_indices = @transform_4, window_bounds = array<i64: 1, 32>}, {transform_indices = @transform_5, window_bounds = array<i64: 8, 32>}]} {
    %c0 = arith.constant 0 : index
    %c0_0 = arith.constant 0 : index
    %0 = vector.load %arg1[%c0, %c0_0] : memref<8x32xf32, #tpu.memory_space<vmem>>, vector<8x32xf32>
    %1 = arith.truncf %0 : vector<8x32xf32> to vector<8x32xbf16>
    %c0_1 = arith.constant 0 : index
    %c0_2 = arith.constant 0 : index
    %2 = vector.load %arg2[%c0_1, %c0_2] : memref<32x128xbf16, #tpu.memory_space<vmem>>, vector<32x128xbf16>
    %cst = arith.constant dense<0.000000e+00> : vector<8x128xf32>
    %3 = tpu.matmul %1, %2, %cst {dimension_numbers = #tpu.dot_dimension_numbers<[1], [0], [0], [1], [0, 0, 1, 1], [], []>} : vector<8x32xbf16>, vector<32x128xbf16>, vector<8x128xf32> -> vector<8x128xf32>
    %c0_3 = arith.constant 0 : index
    %c0_4 = arith.constant 0 : index
    %4 = vector.load %arg3[%c0_3, %c0_4] : memref<1x128xf32, #tpu.memory_space<vmem>>, vector<1x128xf32>
    %5 = vector.broadcast %4 : vector<1x128xf32> to vector<8x128xf32>
    %6 = arith.addf %3, %5 : vector<8x128xf32>
    %cst_5 = arith.constant 5.000000e-01 : f32
    %7 = vector.broadcast %cst_5 : f32 to vector<8x128xf32>
    %8 = arith.mulf %7, %6 : vector<8x128xf32>
    %cst_6 = arith.constant 0.707106769 : f32
    %9 = vector.broadcast %cst_6 : f32 to vector<8x128xf32>
    %10 = arith.mulf %6, %9 : vector<8x128xf32>
    %11 = math.erf %10 : vector<8x128xf32>
    %cst_7 = arith.constant 1.000000e+00 : f32
    %12 = vector.broadcast %cst_7 : f32 to vector<8x128xf32>
    %13 = arith.addf %12, %11 : vector<8x128xf32>
    %14 = arith.mulf %8, %13 : vector<8x128xf32>
    %15 = arith.truncf %14 : vector<8x128xf32> to vector<8x128xbf16>
    %c0_8 = arith.constant 0 : index
    %c0_9 = arith.constant 0 : index
    %16 = vector.load %arg4[%c0_8, %c0_9] : memref<128x32xbf16, #tpu.memory_space<vmem>>, vector<128x32xbf16>
    %cst_10 = arith.constant dense<0.000000e+00> : vector<8x32xf32>
    %17 = tpu.matmul %15, %16, %cst_10 {dimension_numbers = #tpu.dot_dimension_numbers<[1], [0], [0], [1], [0, 0, 1, 1], [], []>} : vector<8x128xbf16>, vector<128x32xbf16>, vector<8x32xf32> -> vector<8x32xf32>
    %c0_11 = arith.constant 0 : index
    %c0_12 = arith.constant 0 : index
    %18 = vector.load %arg5[%c0_11, %c0_12] : memref<1x32xf32, #tpu.memory_space<vmem>>, vector<1x32xf32>
    %19 = vector.broadcast %18 : vector<1x32xf32> to vector<8x32xf32>
    %20 = arith.addf %17, %19 : vector<8x32xf32>
    %c0_13 = arith.constant 0 : index
    %c0_14 = arith.constant 0 : index
    %21 = vector.load %arg6[%c0_13, %c0_14] : memref<8x32xf32, #tpu.memory_space<vmem>>, vector<8x32xf32>
    tpu.vector_store %arg6[%c0_13, %c0_14], %20 {strides = array<i32>} : memref<8x32xf32, #tpu.memory_space<vmem>>, vector<8x32xf32>,
    return
  }
  func.func @transform_0(%arg0: i32) -> (i32, i32) {
    %c0_i32 = arith.constant 0 : i32
    %c0_i32_0 = arith.constant 0 : i32
    return %arg0, %c0_i32 : i32, i32
  }
  func.func @transform_1(%arg0: i32) -> (i32, i32) {
    %c0_i32 = arith.constant 0 : i32
    %c0_i32_0 = arith.constant 0 : i32
    %c0_i32_1 = arith.constant 0 : i32
    return %c0_i32, %c0_i32_0 : i32, i32
  }
  func.func @transform_2(%arg0: i32) -> (i32, i32) {
    %c0_i32 = arith.constant 0 : i32
    %c0_i32_0 = arith.constant 0 : i32
    %c0_i32_1 = arith.constant 0 : i32
    return %c0_i32, %c0_i32_0 : i32, i32
  }
  func.func @transform_3(%arg0: i32) -> (i32, i32) {
    %c0_i32 = arith.constant 0 : i32
    %c0_i32_0 = arith.constant 0 : i32
    %c0_i32_1 = arith.constant 0 : i32
    return %c0_i32, %c0_i32_0 : i32, i32
  }
  func.func @transform_4(%arg0: i32) -> (i32, i32) {
    %c0_i32 = arith.constant 0 : i32
    %c0_i32_0 = arith.constant 0 : i32
    %c0_i32_1 = arith.constant 0 : i32
    return %c0_i32, %c0_i32_0 : i32, i32
  }
  func.func @transform_5(%arg0: i32) -> (i32, i32) {
    %c0_i32 = arith.constant 0 : i32
    %c0_i32_0 = arith.constant 0 : i32
    return %arg0, %c0_i32 : i32, i32
  }
}

</mosaic_0001>

<llo_original>
// kernel: mlp_pallas.1
$region0: #{mlp_pallas.1}
  #allocation0 [shape = 'u32[]', space=smem, size = 0x4, offset = 0x4, fixed_abs, tag = 'smem constant byte address 0x4 - core index']
  #allocation1 [shape = 'u32[144,128]{1,0:T(1,128)}', space=vmem, size = 0x12000, scoped, tag = 'internal scratch']
  %s0 = inlined_call_operand.vmem [shape: f32[16,32], index: 0, kind: input, shape index: {}]
  %s1 = inlined_call_operand.vmem [shape: bf16[32,128], index: 1, kind: input, shape index: {}]
  %s2 = inlined_call_operand.vmem [shape: f32[1,128], index: 2, kind: input, shape index: {}]
  %s3 = inlined_call_operand.vmem [shape: bf16[128,32], index: 3, kind: input, shape index: {}]
  %s4 = inlined_call_operand.vmem [shape: f32[1,32], index: 4, kind: input, shape index: {}]
  %s5 = inlined_call_operand.hbm [shape: f32[16,32], index: 5, kind: output, shape index: {}]
  %s6 = sld [smem:[#allocation0]]
  $region53: #{mlp_pallas.1} parent=0
    _
  %s8 = ssub.s32 1, %s6
  %s9 = scalar_select 0, %s8, %s6
  $region1: #{mlp_pallas.1} parent=0
    #allocation2 [shape = 'u8[8192]{0}', space=vmem, size = 0x2000, scoped, tag = 'output window, operand 0']
    #allocation3 [shape = 's32[2]{0}', space=sflag, size = 0x8, scoped, tag = 'scoped memory for mlp_pallas.1']
    %10 = vsyncpa [#allocation3], 0
    %s11 = scalar_lea.sflag [#allocation3], 1
    %12 = vsyncpa %s11, 0
    loop: start=0, step=1, limit=4
    $region2: #{mlp_pallas.1} parent=1 // loop_pre_header
      _
    $region3: #{mlp_pallas.1} parent=1 // loop_header
      %s14 = sphi 0, %s18
      %p15 = scmp.ge.s32.totalorder %s14, 4
      %s24 = sphi 0, %s26
      %s27 = sphi 0, %s24
      %s28 = sphi 0, %s27
      %s44 = sphi 0, %s28
      %s48 = sphi 0, %s48
      %s50 = sphi 0, %s48
      %s51 = sphi 0, %s50
      %s65 = sphi 0, %s51
      %s69 = sphi 0, %s69
      %s71 = sphi 0, %s69
      %s72 = sphi 0, %s71
      %s86 = sphi 0, %s72
      %s90 = sphi 0, %s90
      %s92 = sphi 0, %s90
      %s93 = sphi 0, %s92
      %s107 = sphi 0, %s93
      %s111 = sphi 0, %s111
      %s113 = sphi 0, %s111
      %s114 = sphi 0, %s113
      %s128 = sphi 0, %s114
      %s134 = sphi 0, %s136
      %s137 = sphi 0, %s134
      %s138 = sphi 0, %s137
      %s154 = sphi 0, %s138
    $region4: #{mlp_pallas.1} parent=1 // loop_header_branch
      %17 = sbr.rel (%p15) target = $region8
    $region5: #{mlp_pallas.1} parent=1 // loop_body
      %s19 = ssub.s32 %s14, 1
      %s20 = ssub.s32 %s14, 2
      %s21 = sadd.s32 %s14, 1
      %s22 = ssub.s32 %s14, %s21
      %p23 = scmp.eq.s32.totalorder %s22, 0
      %s25 = sadd.s32 %s24, 1
      %s26 = scalar_select %p23, %s24, %s25
      %p29 = pneg %p23
      %p30 = scmp.eq.s32.totalorder %s14, 1
      %p31 = por %p29, %p30
      %p32 = scmp.ne.s32.totalorder %s24, %s27
      %p33 = scmp.eq.s32.totalorder %s14, 0
      %p34 = por %p32, %p33
      %p35 = scmp.ne.s32.totalorder %s24, %s27
      %p36 = scmp.eq.s32.totalorder %s19, 1
      %p37 = por %p35, %p36
      %p38 = scmp.ne.s32.totalorder %s27, %s28
      %p39 = scmp.eq.s32.totalorder %s19, 0
      %p40 = por %p38, %p39
      %p41 = scmp.ne.s32.totalorder %s27, %s28
      %p42 = scmp.eq.s32.totalorder %s20, 1
      %p43 = por %p41, %p42
      %p45 = scmp.ne.s32.totalorder %s28, %s44
      %p46 = scmp.eq.s32.totalorder %s20, 0
      %p47 = por %p45, %p46
      %s49 = sadd.s32 %s48, 1
      %p52 = scmp.eq.s32.totalorder %s14, 1
      %p53 = scmp.ne.s32.totalorder %s48, %s50
      %p54 = scmp.eq.s32.totalorder %s14, 0
      %p55 = por %p53, %p54
      %p56 = scmp.ne.s32.totalorder %s48, %s50
      %p57 = scmp.eq.s32.totalorder %s19, 1
      %p58 = por %p56, %p57
      %p59 = scmp.ne.s32.totalorder %s50, %s51
      %p60 = scmp.eq.s32.totalorder %s19, 0
      %p61 = por %p59, %p60
      %p62 = scmp.ne.s32.totalorder %s50, %s51
      %p63 = scmp.eq.s32.totalorder %s20, 1
      %p64 = por %p62, %p63
      %p66 = scmp.ne.s32.totalorder %s51, %s65
      %p67 = scmp.eq.s32.totalorder %s20, 0
      %p68 = por %p66, %p67
      %s70 = sadd.s32 %s69, 1
      %p73 = scmp.eq.s32.totalorder %s14, 1
      %p74 = scmp.ne.s32.totalorder %s69, %s71
      %p75 = scmp.eq.s32.totalorder %s14, 0
      %p76 = por %p74, %p75
      %p77 = scmp.ne.s32.totalorder %s69, %s71
      %p78 = scmp.eq.s32.totalorder %s19, 1
      %p79 = por %p77, %p78
      %p80 = scmp.ne.s32.totalorder %s71, %s72
      %p81 = scmp.eq.s32.totalorder %s19, 0
      %p82 = por %p80, %p81
      %p83 = scmp.ne.s32.totalorder %s71, %s72
      %p84 = scmp.eq.s32.totalorder %s20, 1
      %p85 = por %p83, %p84
      %p87 = scmp.ne.s32.totalorder %s72, %s86
      %p88 = scmp.eq.s32.totalorder %s20, 0
      %p89 = por %p87, %p88
      %s91 = sadd.s32 %s90, 1
      %p94 = scmp.eq.s32.totalorder %s14, 1
      %p95 = scmp.ne.s32.totalorder %s90, %s92
      %p96 = scmp.eq.s32.totalorder %s14, 0
      %p97 = por %p95, %p96
      %p98 = scmp.ne.s32.totalorder %s90, %s92
      %p99 = scmp.eq.s32.totalorder %s19, 1
      %p100 = por %p98, %p99
      %p101 = scmp.ne.s32.totalorder %s92, %s93
      %p102 = scmp.eq.s32.totalorder %s19, 0
      %p103 = por %p101, %p102
      %p104 = scmp.ne.s32.totalorder %s92, %s93
      %p105 = scmp.eq.s32.totalorder %s20, 1
      %p106 = por %p104, %p105
      %p108 = scmp.ne.s32.totalorder %s93, %s107
      %p109 = scmp.eq.s32.totalorder %s20, 0
      %p110 = por %p108, %p109
      %s112 = sadd.s32 %s111, 1
      %p115 = scmp.eq.s32.totalorder %s14, 1
      %p116 = scmp.ne.s32.totalorder %s111, %s113
      %p117 = scmp.eq.s32.totalorder %s14, 0
      %p118 = por %p116, %p117
      %p119 = scmp.ne.s32.totalorder %s111, %s113
      %p120 = scmp.eq.s32.totalorder %s19, 1
      %p121 = por %p119, %p120
      %p122 = scmp.ne.s32.totalorder %s113, %s114
      %p123 = scmp.eq.s32.totalorder %s19, 0
      %p124 = por %p122, %p123
      %p125 = scmp.ne.s32.totalorder %s113, %s114
      %p126 = scmp.eq.s32.totalorder %s20, 1
      %p127 = por %p125, %p126
      %p129 = scmp.ne.s32.totalorder %s114, %s128
      %p130 = scmp.eq.s32.totalorder %s20, 0
      %p131 = por %p129, %p130
      %s132 = ssub.s32 %s14, %s21
      %p133 = scmp.eq.s32.totalorder %s132, 0
      %s135 = sadd.s32 %s134, 1
      %s136 = scalar_select %p133, %s134, %s135
      %p139 = pneg %p133
      %p140 = scmp.eq.s32.totalorder %s14, 1
      %p141 = por %p139, %p140
      %p142 = scmp.ne.s32.totalorder %s134, %s137
      %p143 = scmp.eq.s32.totalorder %s14, 0
      %p144 = por %p142, %p143
      %p145 = scmp.ne.s32.totalorder %s134, %s137
      %p146 = scmp.eq.s32.totalorder %s19, 1
      %p147 = por %p145, %p146
      %p148 = scmp.ne.s32.totalorder %s137, %s138
      %p149 = scmp.eq.s32.totalorder %s19, 0
      %p150 = por %p148, %p149
      %p151 = scmp.ne.s32.totalorder %s137, %s138
      %p152 = scmp.eq.s32.totalorder %s20, 1
      %p153 = por %p151, %p152
      %p155 = scmp.ne.s32.totalorder %s138, %s154
      %p156 = scmp.eq.s32.totalorder %s20, 0
      %p157 = por %p155, %p156
      %p158 = scmp.le.s32.totalorder 1, %s14
      %p159 = scmp.lt.s32.totalorder %s14, 3
      %p160 = pnand %p158, %p159
      %p161 = pneg %p160
      // Predicated region
      $region9: #{mlp_pallas.1} parent=5 // pred_check
        _
      $region10: #{mlp_pallas.1} parent=5 // pred_check_branch
        %163 = sbr.rel (%p160) target = $region12
      $region11: #{mlp_pallas.1} parent=5 // pred_region
        %s164 = ssub.s32 %s14, 1
        // Predicated region
        $region13: #{mlp_pallas.1} parent=11 // pred_check
          %p165 = pneg %p61
        $region14: #{mlp_pallas.1} parent=11 // pred_check_branch
          %167 = sbr.rel (%p165) target = $region16
        $region15: #{mlp_pallas.1} parent=11 // pred_region
          _
        $region16: #{mlp_pallas.1} parent=11 // pred_fallthru
          _
        // Predicated region
        $region17: #{mlp_pallas.1} parent=11 // pred_check
          %p168 = pneg %p82
        $region18: #{mlp_pallas.1} parent=11 // pred_check_branch
          %170 = sbr.rel (%p168) target = $region20
        $region19: #{mlp_pallas.1} parent=11 // pred_region
          _
        $region20: #{mlp_pallas.1} parent=11 // pred_fallthru
          _
        // Predicated region
        $region21: #{mlp_pallas.1} parent=11 // pred_check
          %p171 = pneg %p103
        $region22: #{mlp_pallas.1} parent=11 // pred_check_branch
          %173 = sbr.rel (%p171) target = $region24
        $region23: #{mlp_pallas.1} parent=11 // pred_region
          _
        $region24: #{mlp_pallas.1} parent=11 // pred_fallthru
          _
        // Predicated region
        $region25: #{mlp_pallas.1} parent=11 // pred_check
          %p174 = pneg %p124
        $region26: #{mlp_pallas.1} parent=11 // pred_check_branch
          %176 = sbr.rel (%p174) target = $region28
        $region27: #{mlp_pallas.1} parent=11 // pred_region
          _
        $region28: #{mlp_pallas.1} parent=11 // pred_fallthru
          _
      $region12: #{mlp_pallas.1} parent=5 // pred_fallthru
        _
      %p177 = scmp.lt.s32.totalorder %s14, 2
      // Predicated region
      $region29: #{mlp_pallas.1} parent=5 // pred_check
        %p178 = pneg %p177
      $region30: #{mlp_pallas.1} parent=5 // pred_check_branch
        %180 = sbr.rel (%p178) target = $region32
      $region31: #{mlp_pallas.1} parent=5 // pred_region
        // Predicated region
        $region33: #{mlp_pallas.1} parent=31 // pred_check
          %p181 = pneg %p34
        $region34: #{mlp_pallas.1} parent=31 // pred_check_branch
          %183 = sbr.rel (%p181) target = $region36
        $region35: #{mlp_pallas.1} parent=31 // pred_region
          %p184 = scmp.lt.s32.totalorder %s14, 1
          %s185 = scalar_select %p184, %s14, 1
          %s186 = smul.addr %s185, 8
          %s187 = scalar_lea.vmem %s0, %s186
        $region36: #{mlp_pallas.1} parent=31 // pred_fallthru
          _
      $region32: #{mlp_pallas.1} parent=5 // pred_fallthru
        _
      %p188 = scmp.le.s32.totalorder 1, %s14
      %p189 = scmp.lt.s32.totalorder %s14, 3
      %p190 = pnand %p188, %p189
      %p191 = pneg %p190
      // Predicated region
      $region37: #{mlp_pallas.1} parent=5 // pred_check
        _
      $region38: #{mlp_pallas.1} parent=5 // pred_check_branch
        %193 = sbr.rel (%p190) target = $region40
      $region39: #{mlp_pallas.1} parent=5 // pred_region
        %s194 = ssub.s32 %s14, 1
        %p195 = scmp.lt.s32.totalorder %s19, 1
        %s196 = scalar_select %p195, %s19, 1
        %s197 = smul.addr %s196, 8
        %s198 = scalar_lea.vmem %s0, %s197
        %p199 = pneg %p40
        %p200 = pneg %p37
        %p201 = pneg %p61
        %p202 = pneg %p58
        %p203 = pneg %p82
        %p204 = pneg %p79
        %p205 = pneg %p103
        %p206 = pneg %p100
        %p207 = pneg %p124
        %p208 = pneg %p121
        %p209 = pneg %p150
        %p210 = pneg %p147
        %s211 = sand.u32 %s137, 1
        %s212 = scalar_lea.sflag [#allocation3], %s211
        %s213 = sand.u32 %s137, 1
        %s214 = smul.addr %s213, 8
        %s215 = scalar_lea.vmem [#allocation2], %s214
        %p216 = scmp.lt.s32.totalorder %s19, 1
        %s217 = scalar_select %p216, %s19, 1
        %s218 = smul.addr %s217, 8
        %s219 = scalar_lea.vmem %s0, %s218
        %v221 = vld [vmem:[%s219] sm:$0xff]
        %v222 = vpack.c.bf16 %v221, %v221
        %v223 = vld [vmem:[%s1] sm:$0xf]
        %v224 = vld [vmem:[%s1 + $0x4] sm:$0xf]
        %v225 = vld [vmem:[%s1 + $0x8] sm:$0xf]
        %v226 = vld [vmem:[%s1 + $0xc] sm:$0xf]
        %v227 = vld [vmem:[%s2] sm:$0x1]
        %v229 = vlaneseq
        %v230 = vshrl.u32 %v229, 7
        %v231 = vsub.s32 0, %v230
        %v232 = vrot.slane %v227, %v231
        %v238 = vunpack.c.l.b16 %v223
        %v239 = vunpack.c.l.b16 %v224
        %v240 = vunpack.c.l.b16 %v225
        %v241 = vunpack.c.l.b16 %v226
        %v242 = vpack.c.b16 %v239, %v238
        %v243 = vpack.c.b16 %v241, %v240
        %vm246 = vcmask 261120
        %v248 = vsel %vm246, %v222, 0
        %250 = vmatprep.subr.bf16.mxu0 0
        %251 = vmatpush1.bf16.msra.mxu0 %v242
        %252 = vmatprep.subr.bf16.mxu0 0
        %253 = vmatpush1.bf16.msra.mxu0 %v243
        %254 = vmatprep.subr.bf16.mxu0 0
        %255 = vmatpush1.bf16.msra.mxu0 0
        %256 = vmatprep.subr.bf16.mxu0 0
        %257 = vmatpush1.bf16.msra.mxu0 0
        %258 = vmatprep.subr.bf16.mxu0 0
        %259 = vmatpush1.bf16.msra.mxu0 0
        %260 = vmatprep.subr.bf16.mxu0 0
        %261 = vmatpush1.bf16.msra.mxu0 0
        %262 = vmatprep.subr.bf16.mxu0 0
        %263 = vmatpush1.bf16.msra.mxu0 0
        %264 = vmatprep.subr.bf16.mxu0 0
        %265 = vmatpush1.bf16.msra.mxu0 0
        %266 = vmatprep.subr.bf16.mxu0 0
        %267 = vmatpush1.bf16.msra.mxu0 0
        %268 = vmatprep.subr.bf16.mxu0 0
        %269 = vmatpush1.bf16.msra.mxu0 0
        %270 = vmatprep.subr.bf16.mxu0 0
        %271 = vmatpush1.bf16.msra.mxu0 0
        %272 = vmatprep.subr.bf16.mxu0 0
        %273 = vmatpush1.bf16.msra.mxu0 0
        %274 = vmatprep.subr.bf16.mxu0 0
        %275 = vmatpush1.bf16.msra.mxu0 0
        %276 = vmatprep.subr.bf16.mxu0 0
        %277 = vmatpush1.bf16.msra.mxu0 0
        %278 = vmatprep.subr.bf16.mxu0 0
        %279 = vmatpush1.bf16.msra.mxu0 0
        %280 = vmatprep.subr.bf16.mxu0 0
        %281 = vmatpush1.bf16.msra.mxu0 0
        %282 = vmatprep.mubr.bf16.mxu0 0
        %283 = vmatmul.mubr.bf16.gmra.mrb[0].mxu0 %v248
        %v284 = vpop.f32.mrb[0].mxu0
        %v285 = vadd.f32 %v232, %v284
        %v286 = vpop.f32.mrb[0].mxu0
        %v287 = vpop.f32.mrb[0].mxu0
        %v288 = vpop.f32.mrb[0].mxu0
        %289 = vdwg.mxu0
        %v290 = vmul.f32 %v285, 0.5
        %v291 = vmul.f32 %v285, 0.70710677
        %v292 = verf.f32.pop %v291
        %v293 = vadd.f32 %v292, 1.0
        %v294 = vmul.f32 %v290, %v293
        %v295 = vpack.c.bf16 %v294, %v294
        %v296 = vld [vmem:[%s3] sm:$0xf]
        %v297 = vld [vmem:[%s3 + $0x4] sm:$0xf]
        %v298 = vld [vmem:[%s3 + $0x8] sm:$0xf]
        %v299 = vld [vmem:[%s3 + $0xc] sm:$0xf]
        %v300 = vld [vmem:[%s3 + $0x10] sm:$0xf]
        %v301 = vld [vmem:[%s3 + $0x14] sm:$0xf]
        %v302 = vld [vmem:[%s3 + $0x18] sm:$0xf]
        %v303 = vld [vmem:[%s3 + $0x1c] sm:$0xf]
        %v304 = vld [vmem:[%s3 + $0x20] sm:$0xf]
        %v305 = vld [vmem:[%s3 + $0x24] sm:$0xf]
        %v306 = vld [vmem:[%s3 + $0x28] sm:$0xf]
        %v307 = vld [vmem:[%s3 + $0x2c] sm:$0xf]
        %v308 = vld [vmem:[%s3 + $0x30] sm:$0xf]
        %v309 = vld [vmem:[%s3 + $0x34] sm:$0xf]
        %v310 = vld [vmem:[%s3 + $0x38] sm:$0xf]
        %v311 = vld [vmem:[%s3 + $0x3c] sm:$0xf]
        %v312 = vld [vmem:[%s4] sm:$0x1]
        %v314 = vlaneseq
        %v315 = vshrl.u32 %v314, 7
        %v316 = vsub.s32 0, %v315
        %v317 = vrot.slane %v312, %v316
        %v335 = vunpack.c.l.b16 %v296
        %v336 = vunpack.c.l.b16 %v297
        %v337 = vunpack.c.l.b16 %v298
        %v338 = vunpack.c.l.b16 %v299
        %v339 = vunpack.c.l.b16 %v300
        %v340 = vunpack.c.l.b16 %v301
        %v341 = vunpack.c.l.b16 %v302
        %v342 = vunpack.c.l.b16 %v303
        %v343 = vunpack.c.l.b16 %v304
        %v344 = vunpack.c.l.b16 %v305
        %v345 = vunpack.c.l.b16 %v306
        %v346 = vunpack.c.l.b16 %v307
        %v347 = vunpack.c.l.b16 %v308
        %v348 = vunpack.c.l.b16 %v309
        %v349 = vunpack.c.l.b16 %v310
        %v350 = vunpack.c.l.b16 %v311
        %v351 = vpack.c.b16 %v336, %v335
        %v352 = vpack.c.b16 %v338, %v337
        %v353 = vpack.c.b16 %v340, %v339
        %v354 = vpack.c.b16 %v342, %v341
        %v355 = vpack.c.b16 %v344, %v343
        %v356 = vpack.c.b16 %v346, %v345
        %v357 = vpack.c.b16 %v348, %v347
        %v358 = vpack.c.b16 %v350, %v349
        %367 = vmatprep.subr.bf16.mxu0 0
        %368 = vmatpush1.bf16.msra.mxu0 %v351
        %369 = vmatprep.subr.bf16.mxu0 0
        %370 = vmatpush1.bf16.msra.mxu0 %v352
        %371 = vmatprep.subr.bf16.mxu0 0
        %372 = vmatpush1.bf16.msra.mxu0 %v353
        %373 = vmatprep.subr.bf16.mxu0 0
        %374 = vmatpush1.bf16.msra.mxu0 %v354
        %375 = vmatprep.subr.bf16.mxu0 0
        %376 = vmatpush1.bf16.msra.mxu0 %v355
        %377 = vmatprep.subr.bf16.mxu0 0
        %378 = vmatpush1.bf16.msra.mxu0 %v356
        %379 = vmatprep.subr.bf16.mxu0 0
        %380 = vmatpush1.bf16.msra.mxu0 %v357
        %381 = vmatprep.subr.bf16.mxu0 0
        %382 = vmatpush1.bf16.msra.mxu0 %v358
        %383 = vmatprep.subr.bf16.mxu0 0
        %384 = vmatpush1.bf16.msra.mxu0 0
        %385 = vmatprep.subr.bf16.mxu0 0
        %386 = vmatpush1.bf16.msra.mxu0 0
        %387 = vmatprep.subr.bf16.mxu0 0
        %388 = vmatpush1.bf16.msra.mxu0 0
        %389 = vmatprep.subr.bf16.mxu0 0
        %390 = vmatpush1.bf16.msra.mxu0 0
        %391 = vmatprep.subr.bf16.mxu0 0
        %392 = vmatpush1.bf16.msra.mxu0 0
        %393 = vmatprep.subr.bf16.mxu0 0
        %394 = vmatpush1.bf16.msra.mxu0 0
        %395 = vmatprep.subr.bf16.mxu0 0
        %396 = vmatpush1.bf16.msra.mxu0 0
        %397 = vmatprep.subr.bf16.mxu0 0
        %398 = vmatpush1.bf16.msra.mxu0 0
        %399 = vmatprep.mubr.bf16.mxu0 0
        %400 = vmatmul.mubr.bf16.gmra.mrb[0].mxu0 %v295
        %v401 = vpop.f32.mrb[0].mxu0
        %v402 = vadd.f32 %v317, %v401
        %v403 = vpop.f32.mrb[0].mxu0
        %v404 = vpop.f32.mrb[0].mxu0
        %v405 = vpop.f32.mrb[0].mxu0
        %406 = vdwg.mxu0
        %407 = vst.msk [vmem:[%s215] sm:$0xff] %vm246, %v402
        %s408 = sand.u32 %s137, 1
        %s409 = scalar_lea.sflag [#allocation3], %s408
        %s410 = sand.u32 %s137, 1
        %s411 = smul.addr %s410, 8
        %s412 = scalar_lea.vmem [#allocation2], %s411
        // Predicated region
        $region41: #{mlp_pallas.1} parent=39 // pred_check
          %p413 = pneg %p147
        $region42: #{mlp_pallas.1} parent=39 // pred_check_branch
          %415 = sbr.rel (%p413) target = $region44
        $region43: #{mlp_pallas.1} parent=39 // pred_region
          %s417 = ssub.s32 128, 128
          %418 = vsyncadd %s409, %s417
          %s419 = smul.addr %s19, 128
          %s420 = scalar_lea.hbm %s5, %s419
          %s422 = sshll.u32 %s412, 4
          %s423 = int_to_ptr.vmem [resolvable:$true] %s422
          %425 = dma.vmem_to_hbm [thread:$0]  %s423, 128, %s420, %s409
        $region44: #{mlp_pallas.1} parent=39 // pred_fallthru
          _
      $region40: #{mlp_pallas.1} parent=5 // pred_fallthru
        _
      %p426 = scmp.le.s32.totalorder 2, %s14
      // Predicated region
      $region45: #{mlp_pallas.1} parent=5 // pred_check
        %p427 = pneg %p426
      $region46: #{mlp_pallas.1} parent=5 // pred_check_branch
        %429 = sbr.rel (%p427) target = $region48
      $region47: #{mlp_pallas.1} parent=5 // pred_region
        %s430 = ssub.s32 %s14, 2
        // Predicated region
        $region49: #{mlp_pallas.1} parent=47 // pred_check
          %p431 = pneg %p153
        $region50: #{mlp_pallas.1} parent=47 // pred_check_branch
          %433 = sbr.rel (%p431) target = $region52
        $region51: #{mlp_pallas.1} parent=47 // pred_region
          %s434 = sand.u32 %s138, 1
          %s435 = scalar_lea.sflag [#allocation3], %s434
          %s436 = sand.u32 %s138, 1
          %s437 = smul.addr %s436, 8
          %s438 = scalar_lea.vmem [#allocation2], %s437
          %439 = dma.done %s435, 128
        $region52: #{mlp_pallas.1} parent=47 // pred_fallthru
          _
      $region48: #{mlp_pallas.1} parent=5 // pred_fallthru
        _
    $region6: #{mlp_pallas.1} parent=1 // loop_footer
      %s18 = sadd.s32 1, %s14
    $region7: #{mlp_pallas.1} parent=1 // loop_footer_branch
      %13 = sbr.rel target = $region3
    $region8: #{mlp_pallas.1} parent=1 // loop_exit
      _
    %440 = vsyncpa [#allocation3], 1
    %s441 = scalar_lea.sflag [#allocation3], 1
    %442 = vsyncpa %s441, 1

</llo_original>
